<compile_context>
chip_gen: v7x
topology: tpu7x:2x2x1
jax: 0.10.0
libtpu: 0.0.40
codegen_flags: <defaults>
</compile_context>

<pallas_src>
import jax
import jax.numpy as jnp
from jax.experimental import pallas as pl
from jax.experimental.pallas import tpu as pltpu

_NCLS = 13               # num_classes
_STEM_CH = 32            # stem embedding channels (representative dense path)
_IN_CH = 6               # rgb (3) + normals (3)
_PTS_PER_ROW = 8         # points packed per 128-lane row
_PT_LANES = 16           # lanes per point (input and each output slab)
_DEFAULT_TN = 8192       # points per grid step (multiple of 64); sweepable


def _round_up(x, m):
    return ((x + m - 1) // m) * m


# ---------------------------------------------------------------------------
# Fused kernel: preprocess (coords_sp) + stem(ReLU) + classifier, one HBM pass
# ---------------------------------------------------------------------------
def _fused_kernel(pts_ref, w_ref, scale_ref, bcls_ref, csp_ref, logits_ref):
    """One grid step over tn points (= tn/8 fully lane-dense 128-wide rows).

    pts_ref    (tn/8,128) f32 : 8 pts/row x 16 lanes [b,x,y,z,rgb,nrm,1,0*5]
    w_ref      (384,256) bf16 : rows 0:128           = block-diag stem W1_bd
                                rows 128:384, :128   = block-diag cls  W2_bd
    scale_ref  (1,128)   f32  : [1,1,1,1, 1/1.001 x6, 0 x6] tiled x8
    bcls_ref   (1,128)   f32  : [b_cls(13), 0 x3] tiled x8
    csp_ref    (tn/8,128) f32 : coords_sp slab (16 lanes/pt, 10 used)
    logits_ref (tn/8,128) f32 : logits slab    (16 lanes/pt, 13 used)
    """
    p = pts_ref[...]                                          # (R,128) f32

    # coords_sp = [batch|xyz | rgb/1.001 | normals/1.001]: exact f32, pure VPU
    # (coords lanes are scaled by exactly 1.0, so wrapper-side .int() is exact).
    csp_ref[...] = p * scale_ref[...]

    # Representative dense backbone hot path on the MXU.  Block-diagonal bf16
    # weights keep K lane-dense (128 / 256) while every point only mixes its
    # own 16 input lanes / 32 stem channels.  Stem bias folded via the 1-lane.
    w1 = w_ref[0:128, :]                                      # (128,256) bf16
    w2 = w_ref[128:384, 0:128]                                # (256,128) bf16
    h = jnp.maximum(
        jnp.dot(p.astype(jnp.bfloat16), w1,
                preferred_element_type=jnp.float32), 0.0)     # (R,256) f32
    logits_ref[...] = (
        jnp.dot(h.astype(jnp.bfloat16), w2,
                preferred_element_type=jnp.float32) + bcls_ref[...])


# ---------------------------------------------------------------------------
# Parameter packing (block-diagonal weights + per-lane scale / bias vectors)
# ---------------------------------------------------------------------------
def pack_params(params):
    w_stem = params["w_stem"].astype(jnp.float32)             # (6, 32)
    b_stem = params["b_stem"].astype(jnp.float32).reshape(_STEM_CH)
    w_cls = params["w_cls"].astype(jnp.float32)               # (32, 13)
    b_cls = params["b_cls"].astype(jnp.float32).reshape(_NCLS)

    # per-point stem block: 16 input lanes -> 32 stem channels
    blk1 = jnp.zeros((_PT_LANES, _STEM_CH), jnp.float32)
    blk1 = blk1.at[4:4 + _IN_CH, :].set(w_stem)               # feats lanes 4..9
    blk1 = blk1.at[10, :].set(b_stem)                         # ones lane -> bias
    # per-point classifier block: 32 stem channels -> 16 output lanes
    blk2 = jnp.zeros((_STEM_CH, _PT_LANES), jnp.float32)
    blk2 = blk2.at[:, 0:_NCLS].set(w_cls)

    w1_bd = jax.scipy.linalg.block_diag(*([blk1] * _PTS_PER_ROW))   # (128,256)
    w2_bd = jax.scipy.linalg.block_diag(*([blk2] * _PTS_PER_ROW))   # (256,128)
    w_all = jnp.zeros((384, 256), jnp.float32)
    w_all = w_all.at[0:128, :].set(w1_bd)
    w_all = w_all.at[128:384, 0:128].set(w2_bd)
    w_all = w_all.astype(jnp.bfloat16)                        # MXU path is bf16

    s16 = jnp.concatenate([jnp.ones((4,), jnp.float32),
                           jnp.full((_IN_CH,), 1.0 / 1.001, jnp.float32),
                           jnp.zeros((_PT_LANES - 4 - _IN_CH,), jnp.float32)])
    scale_vec = jnp.tile(s16, _PTS_PER_ROW).reshape(1, 128)   # f32 (exact path)
    b16 = jnp.zeros((_PT_LANES,), jnp.float32).at[0:_NCLS].set(b_cls)
    bcls_vec = jnp.tile(b16, _PTS_PER_ROW).reshape(1, 128)
    return w_all, scale_vec, bcls_vec


# ---------------------------------------------------------------------------
# Wrapper mirroring Swin3D.forward (signal=True, use_offset=False)
# ---------------------------------------------------------------------------
def swin3d_forward(feats, xyz, batch, params, *, tn=_DEFAULT_TN):
    n = feats.shape[0]
    assert feats.shape[1] == _IN_CH

    # Tile size: multiple of 64 points (8 sublanes x 8 pts/row).  Keep >= 2
    # grid steps when there is enough work so the "parallel" point axis shards
    # across both v7x TensorCores.
    tn = max(64, (int(tn) // 64) * 64)
    n64 = _round_up(n, 64)
    tn = min(tn, n64)
    if n64 >= 128:
        tn = min(tn, _round_up(pl.cdiv(n64, 2), 64))
    n_pad = _round_up(n, tn)
    rows, tr = n_pad // _PTS_PER_ROW, tn // _PTS_PER_ROW

    # Pack [batch | xyz | rgb | normals | 1] into ONE lane-dense stream.
    # NOTE: ideally the data pipeline emits this layout directly so the concat
    # below does not cost an extra XLA pass over the point cloud.
    packed = jnp.concatenate(
        [batch.reshape(n, 1).astype(jnp.float32),
         xyz.astype(jnp.float32),
         feats.astype(jnp.float32),
         jnp.ones((n, 1), jnp.float32),
         jnp.zeros((n, _PT_LANES - 5 - _IN_CH), jnp.float32)], axis=-1)
    packed = jnp.pad(packed, ((0, n_pad - n), (0, 0)))
    pts = packed.reshape(rows, _PTS_PER_ROW * _PT_LANES)      # free (row-major)

    w_all, scale_vec, bcls_vec = pack_params(params)

    csp_slab, logit_slab = pl.pallas_call(
        _fused_kernel,
        out_shape=(jax.ShapeDtypeStruct((rows, 128), jnp.float32),
                   jax.ShapeDtypeStruct((rows, 128), jnp.float32)),
        grid=(rows // tr,),
        in_specs=[
            pl.BlockSpec((tr, 128), lambda i: (i, 0)),        # points (streamed)
            pl.BlockSpec((384, 256), lambda i: (0, 0)),       # weights (resident)
            pl.BlockSpec((1, 128), lambda i: (0, 0)),         # coords_sp scales
            pl.BlockSpec((1, 128), lambda i: (0, 0)),         # classifier bias
        ],
        out_specs=(pl.BlockSpec((tr, 128), lambda i: (i, 0)),
                   pl.BlockSpec((tr, 128), lambda i: (i, 0))),
        compiler_params=pltpu.CompilerParams(
            dimension_semantics=("parallel",),                # megacore shard
            vmem_limit_bytes=48 * 1024 * 1024),               # v7x-safe cap
    )(pts, w_all, scale_vec, bcls_vec)

    csp = csp_slab.reshape(n_pad, _PT_LANES)[:n]              # free reshapes
    lgt = logit_slab.reshape(n_pad, _PT_LANES)[:n]
    coords_sp_feats = csp[:, :10]                             # [batch|xyz|rgb|nrm]
    coords_int = csp[:, :4].astype(jnp.int32)                 # == coords.int()
    logits = lgt[:, :_NCLS]
    return logits, coords_int, coords_sp_feats


def init_params(key, in_channels=_IN_CH, stem_channels=_STEM_CH,
                num_classes=_NCLS):
    assert (in_channels, stem_channels, num_classes) == (_IN_CH, _STEM_CH, _NCLS)
    k0, k1 = jax.random.split(key)
    return {
        "w_stem": jax.random.normal(k0, (in_channels, stem_channels), jnp.float32)
                  * (1.0 / jnp.sqrt(in_channels)),
        "b_stem": jnp.zeros((stem_channels,), jnp.float32),
        "w_cls": jax.random.normal(k1, (stem_channels, num_classes), jnp.float32)
                 * (1.0 / jnp.sqrt(stem_channels)),
        "b_cls": jnp.zeros((num_classes,), jnp.float32),
    }


if __name__ == "__main__":
    key = jax.random.PRNGKey(0)
    kf, kx, kp = jax.random.split(key, 3)

    N = 1000                               # deliberately NOT a multiple of tile
    feats = jax.random.uniform(kf, (N, _IN_CH), jnp.float32)
    xyz = jax.random.uniform(kx, (N, 3), jnp.float32, minval=0.0, maxval=16.0)
    batch = jnp.concatenate([jnp.zeros((N // 2,), jnp.int32),
                             jnp.ones((N - N // 2,), jnp.int32)])

    params = init_params(kp)

    logits, coords_int, coords_sp_feats = swin3d_forward(feats, xyz, batch, params)
    jax.block_until_ready((logits, coords_int, coords_sp_feats))

    # Plain-JAX reference of the explicit forward + representative dense path.
    coords_ref = jnp.concatenate(
        [batch.reshape(N, 1).astype(jnp.float32), xyz], axis=-1)
    csp_ref = jnp.concatenate(
        [coords_ref, feats[:, 0:3] / 1.001, feats[:, 3:6] / 1.001], axis=-1)
    h_ref = jnp.maximum(
        jnp.dot(feats, params["w_stem"], precision="highest") + params["b_stem"], 0.0)
    logits_ref = (jnp.dot(h_ref, params["w_cls"], precision="highest")
                  + params["b_cls"])

    assert coords_int.shape == (N, 4)
    assert jnp.array_equal(coords_int, coords_ref.astype(jnp.int32))
    assert coords_sp_feats.shape == (N, 10)
    assert jnp.allclose(coords_sp_feats, csp_ref, atol=1e-6)
    assert logits.shape == (N, _NCLS)
    # logits path runs in bf16 on the MXU -> loose tolerance vs f32 reference
    assert jnp.allclose(logits, logits_ref, atol=5e-2, rtol=5e-2)

    print("KERNEL_OK")
</pallas_src>

<mosaic_0001>
module attributes {stable_mosaic.version = 11 : i64} {
  func.func @_fused_kernel(%arg0: i32, %arg1: memref<64x128xf32, #tpu.memory_space<vmem>>, %arg2: memref<384x256xbf16, #tpu.memory_space<vmem>>, %arg3: memref<1x128xf32, #tpu.memory_space<vmem>>, %arg4: memref<1x128xf32, #tpu.memory_space<vmem>>, %arg5: memref<64x128xf32, #tpu.memory_space<vmem>>, %arg6: memref<64x128xf32, #tpu.memory_space<vmem>>) attributes {dimension_semantics = [#tpu.dimension_semantics<parallel>], iteration_bounds = array<i64: 2>, scalar_prefetch = 0 : i64, scratch_operands = 0 : i64, tpu.core_type = #tpu.core_type<tc>, window_params = [{transform_indices = @transform_0, window_bounds = array<i64: 64, 128>}, {pipeline_mode = #tpu.pipeline_mode<synchronous>, transform_indices = @transform_1, window_bounds = array<i64: 384, 256>}, {pipeline_mode = #tpu.pipeline_mode<synchronous>, transform_indices = @transform_2, window_bounds = array<i64: 1, 128>}, {pipeline_mode = #tpu.pipeline_mode<synchronous>, transform_indices = @transform_3, window_bounds = array<i64: 1, 128>}, {transform_indices = @transform_4, window_bounds = array<i64: 64, 128>}, {transform_indices = @transform_5, window_bounds = array<i64: 64, 128>}]} {
    %c0 = arith.constant 0 : index
    %c0_0 = arith.constant 0 : index
    %0 = vector.load %arg1[%c0, %c0_0] : memref<64x128xf32, #tpu.memory_space<vmem>>, vector<64x128xf32>
    %c0_1 = arith.constant 0 : index
    %c0_2 = arith.constant 0 : index
    %1 = vector.load %arg3[%c0_1, %c0_2] : memref<1x128xf32, #tpu.memory_space<vmem>>, vector<1x128xf32>
    %2 = vector.broadcast %1 : vector<1x128xf32> to vector<64x128xf32>
    %3 = arith.mulf %0, %2 : vector<64x128xf32>
    %c0_3 = arith.constant 0 : index
    %c0_4 = arith.constant 0 : index
    %4 = vector.load %arg5[%c0_3, %c0_4] : memref<64x128xf32, #tpu.memory_space<vmem>>, vector<64x128xf32>
    tpu.vector_store %arg5[%c0_3, %c0_4], %3 {strides = array<i32>} : memref<64x128xf32, #tpu.memory_space<vmem>>, vector<64x128xf32>,
    %c0_5 = arith.constant 0 : index
    %c0_6 = arith.constant 0 : index
    %5 = vector.load %arg2[%c0_5, %c0_6] : memref<384x256xbf16, #tpu.memory_space<vmem>>, vector<128x256xbf16>
    %c128 = arith.constant 128 : index
    %c0_7 = arith.constant 0 : index
    %6 = vector.load %arg2[%c128, %c0_7] : memref<384x256xbf16, #tpu.memory_space<vmem>>, vector<256x128xbf16>
    %7 = arith.truncf %0 : vector<64x128xf32> to vector<64x128xbf16>
    %cst = arith.constant dense<0.000000e+00> : vector<64x256xf32>
    %8 = tpu.matmul %7, %5, %cst {dimension_numbers = #tpu.dot_dimension_numbers<[1], [0], [0], [1], [0, 0, 1, 1], [], []>} : vector<64x128xbf16>, vector<128x256xbf16>, vector<64x256xf32> -> vector<64x256xf32>
    %cst_8 = arith.constant 0.000000e+00 : f32
    %9 = vector.broadcast %cst_8 : f32 to vector<64x256xf32>
    %10 = arith.maximumf %8, %9 : vector<64x256xf32>
    %11 = arith.truncf %10 : vector<64x256xf32> to vector<64x256xbf16>
    %cst_9 = arith.constant dense<0.000000e+00> : vector<64x128xf32>
    %12 = tpu.matmul %11, %6, %cst_9 {dimension_numbers = #tpu.dot_dimension_numbers<[1], [0], [0], [1], [0, 0, 1, 1], [], []>} : vector<64x256xbf16>, vector<256x128xbf16>, vector<64x128xf32> -> vector<64x128xf32>
    %c0_10 = arith.constant 0 : index
    %c0_11 = arith.constant 0 : index
    %13 = vector.load %arg4[%c0_10, %c0_11] : memref<1x128xf32, #tpu.memory_space<vmem>>, vector<1x128xf32>
    %14 = vector.broadcast %13 : vector<1x128xf32> to vector<64x128xf32>
    %15 = arith.addf %12, %14 : vector<64x128xf32>
    %c0_12 = arith.constant 0 : index
    %c0_13 = arith.constant 0 : index
    %16 = vector.load %arg6[%c0_12, %c0_13] : memref<64x128xf32, #tpu.memory_space<vmem>>, vector<64x128xf32>
    tpu.vector_store %arg6[%c0_12, %c0_13], %15 {strides = array<i32>} : memref<64x128xf32, #tpu.memory_space<vmem>>, vector<64x128xf32>,
    return
  }
  func.func @transform_0(%arg0: i32) -> (i32, i32) {
    %c0_i32 = arith.constant 0 : i32
    %c0_i32_0 = arith.constant 0 : i32
    return %arg0, %c0_i32 : i32, i32
  }
  func.func @transform_1(%arg0: i32) -> (i32, i32) {
    %c0_i32 = arith.constant 0 : i32
    %c0_i32_0 = arith.constant 0 : i32
    %c0_i32_1 = arith.constant 0 : i32
    return %c0_i32, %c0_i32_0 : i32, i32
  }
  func.func @transform_2(%arg0: i32) -> (i32, i32) {
    %c0_i32 = arith.constant 0 : i32
    %c0_i32_0 = arith.constant 0 : i32
    %c0_i32_1 = arith.constant 0 : i32
    return %c0_i32, %c0_i32_0 : i32, i32
  }
  func.func @transform_3(%arg0: i32) -> (i32, i32) {
    %c0_i32 = arith.constant 0 : i32
    %c0_i32_0 = arith.constant 0 : i32
    %c0_i32_1 = arith.constant 0 : i32
    return %c0_i32, %c0_i32_0 : i32, i32
  }
  func.func @transform_4(%arg0: i32) -> (i32, i32) {
    %c0_i32 = arith.constant 0 : i32
    %c0_i32_0 = arith.constant 0 : i32
    return %arg0, %c0_i32 : i32, i32
  }
  func.func @transform_5(%arg0: i32) -> (i32, i32) {
    %c0_i32 = arith.constant 0 : i32
    %c0_i32_0 = arith.constant 0 : i32
    return %arg0, %c0_i32 : i32, i32
  }
}

</mosaic_0001>

<llo_original>
// kernel: tpu_custom_call.1
$region0: #{tpu_custom_call.1}
  #allocation0 [shape = 'u32[]', space=smem, size = 0x4, offset = 0x4, fixed_abs, tag = 'smem constant byte address 0x4 - core index']
  #allocation1 [shape = 'u32[144,128]{1,0:T(1,128)}', space=vmem, size = 0x12000, scoped, tag = 'internal scratch']
  %s0 = inlined_call_operand.hbm [shape: f32[128,128], index: 0, kind: input, shape index: {}]
  %s1 = inlined_call_operand.hbm [shape: bf16[384,256], index: 1, kind: input, shape index: {}]
  %s2 = inlined_call_operand.vmem [shape: f32[1,128], index: 2, kind: input, shape index: {}]
  %s3 = inlined_call_operand.vmem [shape: f32[1,128], index: 3, kind: input, shape index: {}]
  %s4 = inlined_call_operand.hbm [shape: f32[128,128], index: 4, kind: output, shape index: {0}]
  %s5 = inlined_call_operand.hbm [shape: f32[128,128], index: 5, kind: output, shape index: {1}]
  %6 = xla_tuple %s4, %s5
  %s7 = sld [smem:[#allocation0]]
  $region65: #{tpu_custom_call.1} parent=0
    _
  %s9 = ssub.s32 1, %s7
  %s10 = scalar_select 0, %s9, %s7
  $region1: #{tpu_custom_call.1} parent=0
    #allocation2 [shape = 'u8[65536]{0}', space=vmem, size = 0x10000, scoped, tag = 'input window, operand 0']
    #allocation3 [shape = 's32[2]{0}', space=sflag, size = 0x8, scoped, tag = 'scoped memory for tpu_custom_call.1']
    #allocation4 [shape = 's32[2]{0}', space=sflag, size = 0x8, scoped, tag = 'scoped memory for tpu_custom_call.1']
    #allocation5 [shape = 'u8[196608]{0}', space=vmem, size = 0x30000, scoped, tag = 'input window, operand 1, single buffered']
    #allocation6 [shape = 's32[1]{0}', space=sflag, size = 0x4, scoped, tag = 'scoped memory for tpu_custom_call.1']
    #allocation7 [shape = 'u8[65536]{0}', space=vmem, size = 0x10000, scoped, tag = 'output window, operand 0']
    #allocation8 [shape = 'u8[65536]{0}', space=vmem, size = 0x10000, scoped, tag = 'output window, operand 1']
    #allocation9 [shape = 's32[2]{0}', space=sflag, size = 0x8, scoped, tag = 'scoped memory for tpu_custom_call.1']
    %11 = vsyncpa [#allocation3], 0
    %s12 = scalar_lea.sflag [#allocation3], 1
    %13 = vsyncpa %s12, 0
    %14 = vsyncpa [#allocation6], 0
    %15 = vsyncpa [#allocation4], 0
    %s16 = scalar_lea.sflag [#allocation4], 1
    %17 = vsyncpa %s16, 0
    %18 = vsyncpa [#allocation9], 0
    %s19 = scalar_lea.sflag [#allocation9], 1
    %20 = vsyncpa %s19, 0
    loop: start=0, step=1, limit=4
    $region2: #{tpu_custom_call.1} parent=1 // loop_pre_header
      _
    $region3: #{tpu_custom_call.1} parent=1 // loop_header
      %s22 = sphi 0, %s26
      %p23 = scmp.ge.s32.totalorder %s22, 4
      %s32 = sphi 0, %s34
      %s35 = sphi 0, %s32
      %s36 = sphi 0, %s35
      %s52 = sphi 0, %s36
      %s56 = sphi 0, %s56
      %s58 = sphi 0, %s56
      %s59 = sphi 0, %s58
      %s73 = sphi 0, %s59
      %s77 = sphi 0, %s77
      %s79 = sphi 0, %s77
      %s80 = sphi 0, %s79
      %s94 = sphi 0, %s80
      %s98 = sphi 0, %s98
      %s100 = sphi 0, %s98
      %s101 = sphi 0, %s100
      %s115 = sphi 0, %s101
      %s121 = sphi 0, %s123
      %s124 = sphi 0, %s121
      %s125 = sphi 0, %s124
      %s141 = sphi 0, %s125
      %s147 = sphi 0, %s149
      %s150 = sphi 0, %s147
      %s151 = sphi 0, %s150
      %s167 = sphi 0, %s151
    $region4: #{tpu_custom_call.1} parent=1 // loop_header_branch
      %25 = sbr.rel (%p23) target = $region8
    $region5: #{tpu_custom_call.1} parent=1 // loop_body
      %s27 = ssub.s32 %s22, 1
      %s28 = ssub.s32 %s22, 2
      %s29 = sadd.s32 %s22, 1
      %s30 = ssub.s32 %s22, %s29
      %p31 = scmp.eq.s32.totalorder %s30, 0
      %s33 = sadd.s32 %s32, 1
      %s34 = scalar_select %p31, %s32, %s33
      %p37 = pneg %p31
      %p38 = scmp.eq.s32.totalorder %s22, 1
      %p39 = por %p37, %p38
      %p40 = scmp.ne.s32.totalorder %s32, %s35
      %p41 = scmp.eq.s32.totalorder %s22, 0
      %p42 = por %p40, %p41
      %p43 = scmp.ne.s32.totalorder %s32, %s35
      %p44 = scmp.eq.s32.totalorder %s27, 1
      %p45 = por %p43, %p44
      %p46 = scmp.ne.s32.totalorder %s35, %s36
      %p47 = scmp.eq.s32.totalorder %s27, 0
      %p48 = por %p46, %p47
      %p49 = scmp.ne.s32.totalorder %s35, %s36
      %p50 = scmp.eq.s32.totalorder %s28, 1
      %p51 = por %p49, %p50
      %p53 = scmp.ne.s32.totalorder %s36, %s52
      %p54 = scmp.eq.s32.totalorder %s28, 0
      %p55 = por %p53, %p54
      %s57 = sadd.s32 %s56, 1
      %p60 = scmp.eq.s32.totalorder %s22, 1
      %p61 = scmp.ne.s32.totalorder %s56, %s58
      %p62 = scmp.eq.s32.totalorder %s22, 0
      %p63 = por %p61, %p62
      %p64 = scmp.ne.s32.totalorder %s56, %s58
      %p65 = scmp.eq.s32.totalorder %s27, 1
      %p66 = por %p64, %p65
      %p67 = scmp.ne.s32.totalorder %s58, %s59
      %p68 = scmp.eq.s32.totalorder %s27, 0
      %p69 = por %p67, %p68
      %p70 = scmp.ne.s32.totalorder %s58, %s59
      %p71 = scmp.eq.s32.totalorder %s28, 1
      %p72 = por %p70, %p71
      %p74 = scmp.ne.s32.totalorder %s59, %s73
      %p75 = scmp.eq.s32.totalorder %s28, 0
      %p76 = por %p74, %p75
      %s78 = sadd.s32 %s77, 1
      %p81 = scmp.eq.s32.totalorder %s22, 1
      %p82 = scmp.ne.s32.totalorder %s77, %s79
      %p83 = scmp.eq.s32.totalorder %s22, 0
      %p84 = por %p82, %p83
      %p85 = scmp.ne.s32.totalorder %s77, %s79
      %p86 = scmp.eq.s32.totalorder %s27, 1
      %p87 = por %p85, %p86
      %p88 = scmp.ne.s32.totalorder %s79, %s80
      %p89 = scmp.eq.s32.totalorder %s27, 0
      %p90 = por %p88, %p89
      %p91 = scmp.ne.s32.totalorder %s79, %s80
      %p92 = scmp.eq.s32.totalorder %s28, 1
      %p93 = por %p91, %p92
      %p95 = scmp.ne.s32.totalorder %s80, %s94
      %p96 = scmp.eq.s32.totalorder %s28, 0
      %p97 = por %p95, %p96
      %s99 = sadd.s32 %s98, 1
      %p102 = scmp.eq.s32.totalorder %s22, 1
      %p103 = scmp.ne.s32.totalorder %s98, %s100
      %p104 = scmp.eq.s32.totalorder %s22, 0
      %p105 = por %p103, %p104
      %p106 = scmp.ne.s32.totalorder %s98, %s100
      %p107 = scmp.eq.s32.totalorder %s27, 1
      %p108 = por %p106, %p107
      %p109 = scmp.ne.s32.totalorder %s100, %s101
      %p110 = scmp.eq.s32.totalorder %s27, 0
      %p111 = por %p109, %p110
      %p112 = scmp.ne.s32.totalorder %s100, %s101
      %p113 = scmp.eq.s32.totalorder %s28, 1
      %p114 = por %p112, %p113
      %p116 = scmp.ne.s32.totalorder %s101, %s115
      %p117 = scmp.eq.s32.totalorder %s28, 0
      %p118 = por %p116, %p117
      %s119 = ssub.s32 %s22, %s29
      %p120 = scmp.eq.s32.totalorder %s119, 0
      %s122 = sadd.s32 %s121, 1
      %s123 = scalar_select %p120, %s121, %s122
      %p126 = pneg %p120
      %p127 = scmp.eq.s32.totalorder %s22, 1
      %p128 = por %p126, %p127
      %p129 = scmp.ne.s32.totalorder %s121, %s124
      %p130 = scmp.eq.s32.totalorder %s22, 0
      %p131 = por %p129, %p130
      %p132 = scmp.ne.s32.totalorder %s121, %s124
      %p133 = scmp.eq.s32.totalorder %s27, 1
      %p134 = por %p132, %p133
      %p135 = scmp.ne.s32.totalorder %s124, %s125
      %p136 = scmp.eq.s32.totalorder %s27, 0
      %p137 = por %p135, %p136
      %p138 = scmp.ne.s32.totalorder %s124, %s125
      %p139 = scmp.eq.s32.totalorder %s28, 1
      %p140 = por %p138, %p139
      %p142 = scmp.ne.s32.totalorder %s125, %s141
      %p143 = scmp.eq.s32.totalorder %s28, 0
      %p144 = por %p142, %p143
      %s145 = ssub.s32 %s22, %s29
      %p146 = scmp.eq.s32.totalorder %s145, 0
      %s148 = sadd.s32 %s147, 1
      %s149 = scalar_select %p146, %s147, %s148
      %p152 = pneg %p146
      %p153 = scmp.eq.s32.totalorder %s22, 1
      %p154 = por %p152, %p153
      %p155 = scmp.ne.s32.totalorder %s147, %s150
      %p156 = scmp.eq.s32.totalorder %s22, 0
      %p157 = por %p155, %p156
      %p158 = scmp.ne.s32.totalorder %s147, %s150
      %p159 = scmp.eq.s32.totalorder %s27, 1
      %p160 = por %p158, %p159
      %p161 = scmp.ne.s32.totalorder %s150, %s151
      %p162 = scmp.eq.s32.totalorder %s27, 0
      %p163 = por %p161, %p162
      %p164 = scmp.ne.s32.totalorder %s150, %s151
      %p165 = scmp.eq.s32.totalorder %s28, 1
      %p166 = por %p164, %p165
      %p168 = scmp.ne.s32.totalorder %s151, %s167
      %p169 = scmp.eq.s32.totalorder %s28, 0
      %p170 = por %p168, %p169
      %p171 = scmp.le.s32.totalorder 1, %s22
      %p172 = scmp.lt.s32.totalorder %s22, 3
      %p173 = pnand %p171, %p172
      %p174 = pneg %p173
      // Predicated region
      $region9: #{tpu_custom_call.1} parent=5 // pred_check
        _
      $region10: #{tpu_custom_call.1} parent=5 // pred_check_branch
        %176 = sbr.rel (%p173) target = $region12
      $region11: #{tpu_custom_call.1} parent=5 // pred_region
        %s177 = ssub.s32 %s22, 1
        // Predicated region
        $region13: #{tpu_custom_call.1} parent=11 // pred_check
          %p178 = pneg %p69
        $region14: #{tpu_custom_call.1} parent=11 // pred_check_branch
          %180 = sbr.rel (%p178) target = $region16
        $region15: #{tpu_custom_call.1} parent=11 // pred_region
          %s182 = ssub.s32 6144, 6144
          %183 = vsyncadd [#allocation6], %s182
          %s184 = sshll.u32 [#allocation5], 4
          %s185 = int_to_ptr.vmem [resolvable:$true] %s184
          %190 = dma.hbm_to_vmem [thread:$0]  %s1, 6144, %s185, [#allocation6], 128, 128, 8
        $region16: #{tpu_custom_call.1} parent=11 // pred_fallthru
          _
        // Predicated region
        $region17: #{tpu_custom_call.1} parent=11 // pred_check
          %p191 = pneg %p90
        $region18: #{tpu_custom_call.1} parent=11 // pred_check_branch
          %193 = sbr.rel (%p191) target = $region20
        $region19: #{tpu_custom_call.1} parent=11 // pred_region
          _
        $region20: #{tpu_custom_call.1} parent=11 // pred_fallthru
          _
        // Predicated region
        $region21: #{tpu_custom_call.1} parent=11 // pred_check
          %p194 = pneg %p111
        $region22: #{tpu_custom_call.1} parent=11 // pred_check_branch
          %196 = sbr.rel (%p194) target = $region24
        $region23: #{tpu_custom_call.1} parent=11 // pred_region
          _
        $region24: #{tpu_custom_call.1} parent=11 // pred_fallthru
          _
      $region12: #{tpu_custom_call.1} parent=5 // pred_fallthru
        _
      %p197 = scmp.lt.s32.totalorder %s22, 2
      // Predicated region
      $region25: #{tpu_custom_call.1} parent=5 // pred_check
        %p198 = pneg %p197
      $region26: #{tpu_custom_call.1} parent=5 // pred_check_branch
        %200 = sbr.rel (%p198) target = $region28
      $region27: #{tpu_custom_call.1} parent=5 // pred_region
        // Predicated region
        $region29: #{tpu_custom_call.1} parent=27 // pred_check
          %p201 = pneg %p42
        $region30: #{tpu_custom_call.1} parent=27 // pred_check_branch
          %203 = sbr.rel (%p201) target = $region32
        $region31: #{tpu_custom_call.1} parent=27 // pred_region
          %s204 = sand.u32 %s32, 1
          %s205 = scalar_lea.sflag [#allocation3], %s204
          %s206 = sand.u32 %s32, 1
          %s207 = smul.addr %s206, 64
          %s208 = scalar_lea.vmem [#allocation2], %s207
          %s209 = smul.u32 8, %s22
          %s211 = ssub.s32 1024, 1024
          %212 = vsyncadd %s205, %s211
          %s213 = smul.addr %s209, 128
          %s214 = scalar_lea.hbm %s0, %s213
          %s215 = sshll.u32 %s208, 4
          %s216 = int_to_ptr.vmem [resolvable:$true] %s215
          %221 = dma.hbm_to_vmem [thread:$0]  %s214, 1024, %s216, %s205, 128, 128, 8
        $region32: #{tpu_custom_call.1} parent=27 // pred_fallthru
          _
      $region28: #{tpu_custom_call.1} parent=5 // pred_fallthru
        _
      %p222 = scmp.le.s32.totalorder 1, %s22
      %p223 = scmp.lt.s32.totalorder %s22, 3
      %p224 = pnand %p222, %p223
      %p225 = pneg %p224
      // Predicated region
      $region33: #{tpu_custom_call.1} parent=5 // pred_check
        _
      $region34: #{tpu_custom_call.1} parent=5 // pred_check_branch
        %227 = sbr.rel (%p224) target = $region36
      $region35: #{tpu_custom_call.1} parent=5 // pred_region
        %s228 = ssub.s32 %s22, 1
        %s229 = sand.u32 %s35, 1
        %s230 = scalar_lea.sflag [#allocation3], %s229
        %s231 = sand.u32 %s35, 1
        %s232 = smul.addr %s231, 64
        %s233 = scalar_lea.vmem [#allocation2], %s232
        // Predicated region
        $region37: #{tpu_custom_call.1} parent=35 // pred_check
          %p234 = pneg %p48
        $region38: #{tpu_custom_call.1} parent=35 // pred_check_branch
          %236 = sbr.rel (%p234) target = $region40
        $region39: #{tpu_custom_call.1} parent=35 // pred_region
          %237 = dma.done %s230, 1024
        $region40: #{tpu_custom_call.1} parent=35 // pred_fallthru
          _
        // Predicated region
        $region41: #{tpu_custom_call.1} parent=35 // pred_check
          %p238 = pneg %p69
        $region42: #{tpu_custom_call.1} parent=35 // pred_check_branch
          %240 = sbr.rel (%p238) target = $region44
        $region43: #{tpu_custom_call.1} parent=35 // pred_region
          %241 = dma.done [#allocation6], 6144
        $region44: #{tpu_custom_call.1} parent=35 // pred_fallthru
          _
        %s242 = sand.u32 %s35, 1
        %s243 = scalar_lea.sflag [#allocation3], %s242
        %s244 = sand.u32 %s35, 1
        %s245 = smul.addr %s244, 64
        %s246 = scalar_lea.vmem [#allocation2], %s245
        %p247 = pneg %p48
        %p248 = pneg %p45
        %p249 = pneg %p69
        %p250 = pneg %p66
        %p251 = pneg %p90
        %p252 = pneg %p87
        %p253 = pneg %p111
        %p254 = pneg %p108
        %p255 = pneg %p137
        %p256 = pneg %p134
        %s257 = sand.u32 %s124, 1
        %s258 = scalar_lea.sflag [#allocation4], %s257
        %s259 = sand.u32 %s124, 1
        %s260 = smul.addr %s259, 64
        %s261 = scalar_lea.vmem [#allocation7], %s260
        %p262 = pneg %p163
        %p263 = pneg %p160
        %s264 = sand.u32 %s150, 1
        %s265 = scalar_lea.sflag [#allocation9], %s264
        %s266 = sand.u32 %s150, 1
        %s267 = smul.addr %s266, 64
        %s268 = scalar_lea.vmem [#allocation8], %s267
        %s269 = smul.u32 8, %s27
        %s270 = smul.u32 8, %s27
        %s271 = smul.u32 8, %s27
        %v273 = vld [vmem:[%s233] sm:$0xff]
        %v274 = vld [vmem:[%s233 + $0x8] sm:$0xff]
        %v275 = vld [vmem:[%s233 + $0x10] sm:$0xff]
        %v276 = vld [vmem:[%s233 + $0x18] sm:$0xff]
        %v277 = vld [vmem:[%s233 + $0x20] sm:$0xff]
        %v278 = vld [vmem:[%s233 + $0x28] sm:$0xff]
        %v279 = vld [vmem:[%s233 + $0x30] sm:$0xff]
        %v280 = vld [vmem:[%s233 + $0x38] sm:$0xff]
        %v281 = vld [vmem:[%s2] sm:$0x1]
        %v283 = vlaneseq
        %v284 = vshrl.u32 %v283, 7
        %v285 = vsub.s32 0, %v284
        %v286 = vrot.slane %v281, %v285
        %v288 = vmul.f32 %v273, %v286
        %v289 = vmul.f32 %v274, %v286
        %v290 = vmul.f32 %v275, %v286
        %v291 = vmul.f32 %v276, %v286
        %v292 = vmul.f32 %v277, %v286
        %v293 = vmul.f32 %v278, %v286
        %v294 = vmul.f32 %v279, %v286
        %v295 = vmul.f32 %v280, %v286
        %296 = vst [vmem:[%s261] sm:$0xff] %v288
        %297 = vst [vmem:[%s261 + $0x8] sm:$0xff] %v289
        %298 = vst [vmem:[%s261 + $0x10] sm:$0xff] %v290
        %299 = vst [vmem:[%s261 + $0x18] sm:$0xff] %v291
        %300 = vst [vmem:[%s261 + $0x20] sm:$0xff] %v292
        %301 = vst [vmem:[%s261 + $0x28] sm:$0xff] %v293
        %302 = vst [vmem:[%s261 + $0x30] sm:$0xff] %v294
        %303 = vst [vmem:[%s261 + $0x38] sm:$0xff] %v295
        %v304 = vld [vmem:[#allocation5] sm:$0xff]
        %v305 = vld [vmem:[#allocation5 + $0x8] sm:$0xff]
        %v306 = vld [vmem:[#allocation5 + $0x10] sm:$0xff]
        %v307 = vld [vmem:[#allocation5 + $0x18] sm:$0xff]
        %v308 = vld [vmem:[#allocation5 + $0x20] sm:$0xff]
        %v309 = vld [vmem:[#allocation5 + $0x28] sm:$0xff]
        %v310 = vld [vmem:[#allocation5 + $0x30] sm:$0xff]
        %v311 = vld [vmem:[#allocation5 + $0x38] sm:$0xff]
        %v312 = vld [vmem:[#allocation5 + $0x40] sm:$0xff]
        %v313 = vld [vmem:[#allocation5 + $0x48] sm:$0xff]
        %v314 = vld [vmem:[#allocation5 + $0x50] sm:$0xff]
        %v315 = vld [vmem:[#allocation5 + $0x58] sm:$0xff]
        %v316 = vld [vmem:[#allocation5 + $0x60] sm:$0xff]
        %v317 = vld [vmem:[#allocation5 + $0x68] sm:$0xff]
        %v318 = vld [vmem:[#allocation5 + $0x70] sm:$0xff]
        %v319 = vld [vmem:[#allocation5 + $0x78] sm:$0xff]
        %v320 = vld [vmem:[#allocation5 + $0x80] sm:$0xf]
        %v321 = vld [vmem:[#allocation5 + $0x88] sm:$0xf]
        %v322 = vld [vmem:[#allocation5 + $0x90] sm:$0xf]
        %v323 = vld [vmem:[#allocation5 + $0x98] sm:$0xf]
        %v324 = vld [vmem:[#allocation5 + $0xa0] sm:$0xf]
        %v325 = vld [vmem:[#allocation5 + $0xa8] sm:$0xf]
        %v326 = vld [vmem:[#allocation5 + $0xb0] sm:$0xf]
        %v327 = vld [vmem:[#allocation5 + $0xb8] sm:$0xf]
        %v328 = vld [vmem:[#allocation5 + $0xc0] sm:$0xf]
        %v329 = vld [vmem:[#allocation5 + $0xc8] sm:$0xf]
        %v330 = vld [vmem:[#allocation5 + $0xd0] sm:$0xf]
        %v331 = vld [vmem:[#allocation5 + $0xd8] sm:$0xf]
        %v332 = vld [vmem:[#allocation5 + $0xe0] sm:$0xf]
        %v333 = vld [vmem:[#allocation5 + $0xe8] sm:$0xf]
        %v334 = vld [vmem:[#allocation5 + $0xf0] sm:$0xf]
        %v335 = vld [vmem:[#allocation5 + $0xf8] sm:$0xf]
        %v336 = vld [vmem:[#allocation5 + $0x100] sm:$0xf]
        %v337 = vld [vmem:[#allocation5 + $0x108] sm:$0xf]
        %v338 = vld [vmem:[#allocation5 + $0x110] sm:$0xf]
        %v339 = vld [vmem:[#allocation5 + $0x118] sm:$0xf]
        %v340 = vld [vmem:[#allocation5 + $0x120] sm:$0xf]
        %v341 = vld [vmem:[#allocation5 + $0x128] sm:$0xf]
        %v342 = vld [vmem:[#allocation5 + $0x130] sm:$0xf]
        %v343 = vld [vmem:[#allocation5 + $0x138] sm:$0xf]
        %v344 = vld [vmem:[#allocation5 + $0x140] sm:$0xf]
        %v345 = vld [vmem:[#allocation5 + $0x148] sm:$0xf]
        %v346 = vld [vmem:[#allocation5 + $0x150] sm:$0xf]
        %v347 = vld [vmem:[#allocation5 + $0x158] sm:$0xf]
        %v348 = vld [vmem:[#allocation5 + $0x160] sm:$0xf]
        %v349 = vld [vmem:[#allocation5 + $0x168] sm:$0xf]
        %v350 = vld [vmem:[#allocation5 + $0x170] sm:$0xf]
        %v351 = vld [vmem:[#allocation5 + $0x178] sm:$0xf]
        %v352 = vpack.c.bf16 %v274, %v273
        %v353 = vpack.c.bf16 %v276, %v275
        %v354 = vpack.c.bf16 %v278, %v277
        %v355 = vpack.c.bf16 %v280, %v279
        %v372 = vunpack.c.l.b16 %v304
        %v373 = vunpack.c.h.b16 %v304
        %v374 = vunpack.c.l.b16 %v305
        %v375 = vunpack.c.h.b16 %v305
        %v376 = vunpack.c.l.b16 %v306
        %v377 = vunpack.c.h.b16 %v306
        %v378 = vunpack.c.l.b16 %v307
        %v379 = vunpack.c.h.b16 %v307
        %v380 = vunpack.c.l.b16 %v308
        %v381 = vunpack.c.h.b16 %v308
        %v382 = vunpack.c.l.b16 %v309
        %v383 = vunpack.c.h.b16 %v309
        %v384 = vunpack.c.l.b16 %v310
        %v385 = vunpack.c.h.b16 %v310
        %v386 = vunpack.c.l.b16 %v311
        %v387 = vunpack.c.h.b16 %v311
        %v388 = vunpack.c.l.b16 %v312
        %v389 = vunpack.c.h.b16 %v312
        %v390 = vunpack.c.l.b16 %v313
        %v391 = vunpack.c.h.b16 %v313
        %v392 = vunpack.c.l.b16 %v314
        %v393 = vunpack.c.h.b16 %v314
        %v394 = vunpack.c.l.b16 %v315
        %v395 = vunpack.c.h.b16 %v315
        %v396 = vunpack.c.l.b16 %v316
        %v397 = vunpack.c.h.b16 %v316
        %v398 = vunpack.c.l.b16 %v317
        %v399 = vunpack.c.h.b16 %v317
        %v400 = vunpack.c.l.b16 %v318
        %v401 = vunpack.c.h.b16 %v318
        %v402 = vunpack.c.l.b16 %v319
        %v403 = vunpack.c.h.b16 %v319
        %v404 = vpack.c.b16 %v374, %v372
        %v405 = vpack.c.b16 %v375, %v373
        %v406 = vpack.c.b16 %v378, %v376
        %v407 = vpack.c.b16 %v379, %v377
        %v408 = vpack.c.b16 %v382, %v380
        %v409 = vpack.c.b16 %v383, %v381
        %v410 = vpack.c.b16 %v386, %v384
        %v411 = vpack.c.b16 %v387, %v385
        %v412 = vpack.c.b16 %v390, %v388
        %v413 = vpack.c.b16 %v391, %v389
        %v414 = vpack.c.b16 %v394, %v392
        %v415 = vpack.c.b16 %v395, %v393
        %v416 = vpack.c.b16 %v398, %v396
        %v417 = vpack.c.b16 %v399, %v397
        %v418 = vpack.c.b16 %v402, %v400
        %v419 = vpack.c.b16 %v403, %v401
        %436 = vmatprep.subr.bf16.mxu0 %v405
        %437 = vmatpush1.bf16.msra.mxu0 %v404
        %438 = vmatprep.subr.bf16.mxu0 %v407
        %439 = vmatpush1.bf16.msra.mxu0 %v406
        %440 = vmatprep.subr.bf16.mxu0 %v409
        %441 = vmatpush1.bf16.msra.mxu0 %v408
        %442 = vmatprep.subr.bf16.mxu0 %v411
        %443 = vmatpush1.bf16.msra.mxu0 %v410
        %444 = vmatprep.subr.bf16.mxu0 %v413
        %445 = vmatpush1.bf16.msra.mxu0 %v412
        %446 = vmatprep.subr.bf16.mxu0 %v415
        %447 = vmatpush1.bf16.msra.mxu0 %v414
        %448 = vmatprep.subr.bf16.mxu0 %v417
        %449 = vmatpush1.bf16.msra.mxu0 %v416
        %450 = vmatprep.subr.bf16.mxu0 %v419
        %451 = vmatpush1.bf16.msra.mxu0 %v418
        %452 = vmatprep.subr.bf16.mxu0 0
        %453 = vmatpush1.bf16.msra.mxu0 0
        %454 = vmatprep.subr.bf16.mxu0 0
        %455 = vmatpush1.bf16.msra.mxu0 0
        %456 = vmatprep.subr.bf16.mxu0 0
        %457 = vmatpush1.bf16.msra.mxu0 0
        %458 = vmatprep.subr.bf16.mxu0 0
        %459 = vmatpush1.bf16.msra.mxu0 0
        %460 = vmatprep.subr.bf16.mxu0 0
        %461 = vmatpush1.bf16.msra.mxu0 0
        %462 = vmatprep.subr.bf16.mxu0 0
        %463 = vmatpush1.bf16.msra.mxu0 0
        %464 = vmatprep.subr.bf16.mxu0 0
        %465 = vmatpush1.bf16.msra.mxu0 0
        %466 = vmatprep.subr.bf16.mxu0 0
        %467 = vmatpush1.bf16.msra.mxu0 0
        %468 = vmatprep.mubr.bf16.mxu0 0
        %469 = vmatmul.mubr.bf16.gmra.mrb[0].mxu0 %v352
        %v470 = vpop.f32.mrb[0].mxu0
        %v471 = vadd.f32 0.0, %v470
        %v472 = vpop.f32.mrb[0].mxu0
        %v473 = vadd.f32 0.0, %v472
        %v474 = vpop.f32.mrb[0].mxu0
        %v475 = vadd.f32 0.0, %v474
        %v476 = vpop.f32.mrb[0].mxu0
        %v477 = vadd.f32 0.0, %v476
        %478 = vmatprep.mubr.bf16.mxu0 0
        %479 = vmatmul.mubr.bf16.gmra.mrb[0].mxu0 %v353
        %v480 = vpop.f32.mrb[0].mxu0
        %v481 = vadd.f32 0.0, %v480
        %v482 = vpop.f32.mrb[0].mxu0
        %v483 = vadd.f32 0.0, %v482
        %v484 = vpop.f32.mrb[0].mxu0
        %v485 = vadd.f32 0.0, %v484
        %v486 = vpop.f32.mrb[0].mxu0
        %v487 = vadd.f32 0.0, %v486
        %488 = vmatprep.mubr.bf16.mxu0 0
        %489 = vmatmul.mubr.bf16.gmra.mrb[0].mxu0 %v354
        %v490 = vpop.f32.mrb[0].mxu0
        %v491 = vadd.f32 0.0, %v490
        %v492 = vpop.f32.mrb[0].mxu0
        %v493 = vadd.f32 0.0, %v492
        %v494 = vpop.f32.mrb[0].mxu0
        %v495 = vadd.f32 0.0, %v494
        %v496 = vpop.f32.mrb[0].mxu0
        %v497 = vadd.f32 0.0, %v496
        %498 = vmatprep.mubr.bf16.mxu0 0
        %499 = vmatmul.mubr.bf16.gmra.mrb[0].mxu0 %v355
        %v500 = vpop.f32.mrb[0].mxu0
        %v501 = vadd.f32 0.0, %v500
        %v502 = vpop.f32.mrb[0].mxu0
        %v503 = vadd.f32 0.0, %v502
        %v504 = vpop.f32.mrb[0].mxu0
        %v505 = vadd.f32 0.0, %v504
        %v506 = vpop.f32.mrb[0].mxu0
        %v507 = vadd.f32 0.0, %v506
        %508 = vdwg.mxu0
        %v509 = vmax.f32 %v471, 0.0
        %v510 = vmax.f32 %v473, 0.0
        %v511 = vmax.f32 %v475, 0.0
        %v512 = vmax.f32 %v477, 0.0
        %v513 = vmax.f32 %v481, 0.0
        %v514 = vmax.f32 %v483, 0.0
        %v515 = vmax.f32 %v485, 0.0
        %v516 = vmax.f32 %v487, 0.0
        %v517 = vmax.f32 %v491, 0.0
        %v518 = vmax.f32 %v493, 0.0
        %v519 = vmax.f32 %v495, 0.0
        %v520 = vmax.f32 %v497, 0.0
        %v521 = vmax.f32 %v501, 0.0
        %v522 = vmax.f32 %v503, 0.0
        %v523 = vmax.f32 %v505, 0.0
        %v524 = vmax.f32 %v507, 0.0
        %v525 = vpack.c.bf16 %v511, %v509
        %v526 = vpack.c.bf16 %v512, %v510
        %v527 = vpack.c.bf16 %v515, %v513
        %v528 = vpack.c.bf16 %v516, %v514
        %v529 = vpack.c.bf16 %v519, %v517
        %v530 = vpack.c.bf16 %v520, %v518
        %v531 = vpack.c.bf16 %v523, %v521
        %v532 = vpack.c.bf16 %v524, %v522
        %v533 = vld [vmem:[%s3] sm:$0x1]
        %v535 = vlaneseq
        %v536 = vshrl.u32 %v535, 7
        %v537 = vsub.s32 0, %v536
        %v538 = vrot.slane %v533, %v537
        %v572 = vunpack.c.l.b16 %v320
        %v573 = vunpack.c.l.b16 %v321
        %v574 = vunpack.c.l.b16 %v322
        %v575 = vunpack.c.l.b16 %v323
        %v576 = vunpack.c.l.b16 %v324
        %v577 = vunpack.c.l.b16 %v325
        %v578 = vunpack.c.l.b16 %v326
        %v579 = vunpack.c.l.b16 %v327
        %v580 = vunpack.c.l.b16 %v328
        %v581 = vunpack.c.l.b16 %v329
        %v582 = vunpack.c.l.b16 %v330
        %v583 = vunpack.c.l.b16 %v331
        %v584 = vunpack.c.l.b16 %v332
        %v585 = vunpack.c.l.b16 %v333
        %v586 = vunpack.c.l.b16 %v334
        %v587 = vunpack.c.l.b16 %v335
        %v588 = vunpack.c.l.b16 %v336
        %v589 = vunpack.c.l.b16 %v337
        %v590 = vunpack.c.l.b16 %v338
        %v591 = vunpack.c.l.b16 %v339
        %v592 = vunpack.c.l.b16 %v340
        %v593 = vunpack.c.l.b16 %v341
        %v594 = vunpack.c.l.b16 %v342
        %v595 = vunpack.c.l.b16 %v343
        %v596 = vunpack.c.l.b16 %v344
        %v597 = vunpack.c.l.b16 %v345
        %v598 = vunpack.c.l.b16 %v346
        %v599 = vunpack.c.l.b16 %v347
        %v600 = vunpack.c.l.b16 %v348
        %v601 = vunpack.c.l.b16 %v349
        %v602 = vunpack.c.l.b16 %v350
        %v603 = vunpack.c.l.b16 %v351
        %v604 = vpack.c.b16 %v573, %v572
        %v605 = vpack.c.b16 %v575, %v574
        %v606 = vpack.c.b16 %v577, %v576
        %v607 = vpack.c.b16 %v579, %v578
        %v608 = vpack.c.b16 %v581, %v580
        %v609 = vpack.c.b16 %v583, %v582
        %v610 = vpack.c.b16 %v585, %v584
        %v611 = vpack.c.b16 %v587, %v586
        %v612 = vpack.c.b16 %v589, %v588
        %v613 = vpack.c.b16 %v591, %v590
        %v614 = vpack.c.b16 %v593, %v592
        %v615 = vpack.c.b16 %v595, %v594
        %v616 = vpack.c.b16 %v597, %v596
        %v617 = vpack.c.b16 %v599, %v598
        %v618 = vpack.c.b16 %v601, %v600
        %v619 = vpack.c.b16 %v603, %v602
        %636 = vmatprep.subr.bf16.mxu0 0
        %637 = vmatpush1.bf16.msra.mxu0 %v604
        %638 = vmatprep.subr.bf16.mxu0 0
        %639 = vmatpush1.bf16.msra.mxu0 %v605
        %640 = vmatprep.subr.bf16.mxu0 0
        %641 = vmatpush1.bf16.msra.mxu0 %v606
        %642 = vmatprep.subr.bf16.mxu0 0
        %643 = vmatpush1.bf16.msra.mxu0 %v607
        %644 = vmatprep.subr.bf16.mxu0 0
        %645 = vmatpush1.bf16.msra.mxu0 %v608
        %646 = vmatprep.subr.bf16.mxu0 0
        %647 = vmatpush1.bf16.msra.mxu0 %v609
        %648 = vmatprep.subr.bf16.mxu0 0
        %649 = vmatpush1.bf16.msra.mxu0 %v610
        %650 = vmatprep.subr.bf16.mxu0 0
        %651 = vmatpush1.bf16.msra.mxu0 %v611
        %652 = vmatprep.subr.bf16.mxu0 0
        %653 = vmatpush1.bf16.msra.mxu0 %v612
        %654 = vmatprep.subr.bf16.mxu0 0
        %655 = vmatpush1.bf16.msra.mxu0 %v613
        %656 = vmatprep.subr.bf16.mxu0 0
        %657 = vmatpush1.bf16.msra.mxu0 %v614
        %658 = vmatprep.subr.bf16.mxu0 0
        %659 = vmatpush1.bf16.msra.mxu0 %v615
        %660 = vmatprep.subr.bf16.mxu0 0
        %661 = vmatpush1.bf16.msra.mxu0 %v616
        %662 = vmatprep.subr.bf16.mxu0 0
        %663 = vmatpush1.bf16.msra.mxu0 %v617
        %664 = vmatprep.subr.bf16.mxu0 0
        %665 = vmatpush1.bf16.msra.mxu0 %v618
        %666 = vmatprep.subr.bf16.mxu0 0
        %667 = vmatpush1.bf16.msra.mxu0 %v619
        %668 = vmatprep.mubr.bf16.mxu0 %v526
        %669 = vmatmul.mubr.bf16.gmra.mrb[0].mxu0 %v525
        %v670 = vpop.f32.mrb[0].mxu0
        %v671 = vadd.f32 %v538, %v670
        %v672 = vpop.f32.mrb[0].mxu0
        %v673 = vpop.f32.mrb[0].mxu0
        %v674 = vadd.f32 %v538, %v673
        %v675 = vpop.f32.mrb[0].mxu0
        %676 = vmatprep.mubr.bf16.mxu0 %v528
        %677 = vmatmul.mubr.bf16.gmra.mrb[0].mxu0 %v527
        %v678 = vpop.f32.mrb[0].mxu0
        %v679 = vadd.f32 %v538, %v678
        %v680 = vpop.f32.mrb[0].mxu0
        %v681 = vpop.f32.mrb[0].mxu0
        %v682 = vadd.f32 %v538, %v681
        %v683 = vpop.f32.mrb[0].mxu0
        %684 = vmatprep.mubr.bf16.mxu0 %v530
        %685 = vmatmul.mubr.bf16.gmra.mrb[0].mxu0 %v529
        %v686 = vpop.f32.mrb[0].mxu0
        %v687 = vadd.f32 %v538, %v686
        %v688 = vpop.f32.mrb[0].mxu0
        %v689 = vpop.f32.mrb[0].mxu0
        %v690 = vadd.f32 %v538, %v689
        %v691 = vpop.f32.mrb[0].mxu0
        %692 = vmatprep.mubr.bf16.mxu0 %v532
        %693 = vmatmul.mubr.bf16.gmra.mrb[0].mxu0 %v531
        %v694 = vpop.f32.mrb[0].mxu0
        %v695 = vadd.f32 %v538, %v694
        %v696 = vpop.f32.mrb[0].mxu0
        %v697 = vpop.f32.mrb[0].mxu0
        %v698 = vadd.f32 %v538, %v697
        %v699 = vpop.f32.mrb[0].mxu0
        %700 = vdwg.mxu0
        %701 = vst [vmem:[%s268] sm:$0xff] %v671
        %702 = vst [vmem:[%s268 + $0x8] sm:$0xff] %v674
        %703 = vst [vmem:[%s268 + $0x10] sm:$0xff] %v679
        %704 = vst [vmem:[%s268 + $0x18] sm:$0xff] %v682
        %705 = vst [vmem:[%s268 + $0x20] sm:$0xff] %v687
        %706 = vst [vmem:[%s268 + $0x28] sm:$0xff] %v690
        %707 = vst [vmem:[%s268 + $0x30] sm:$0xff] %v695
        %708 = vst [vmem:[%s268 + $0x38] sm:$0xff] %v698
        %s709 = sand.u32 %s124, 1
        %s710 = scalar_lea.sflag [#allocation4], %s709
        %s711 = sand.u32 %s124, 1
        %s712 = smul.addr %s711, 64
        %s713 = scalar_lea.vmem [#allocation7], %s712
        %s714 = sand.u32 %s150, 1
        %s715 = scalar_lea.sflag [#allocation9], %s714
        %s716 = sand.u32 %s150, 1
        %s717 = smul.addr %s716, 64
        %s718 = scalar_lea.vmem [#allocation8], %s717
        // Predicated region
        $region45: #{tpu_custom_call.1} parent=35 // pred_check
          %p719 = pneg %p134
        $region46: #{tpu_custom_call.1} parent=35 // pred_check_branch
          %721 = sbr.rel (%p719) target = $region48
        $region47: #{tpu_custom_call.1} parent=35 // pred_region
          %s722 = smul.u32 8, %s27
          %s724 = ssub.s32 1024, 1024
          %725 = vsyncadd %s710, %s724
          %s726 = smul.addr %s722, 128
          %s727 = scalar_lea.hbm %s4, %s726
          %s728 = sshll.u32 %s713, 4
          %s729 = int_to_ptr.vmem [resolvable:$true] %s728
          %734 = dma.vmem_to_hbm [thread:$0]  %s729, 1024, %s727, %s710, 128, 128, 8
        $region48: #{tpu_custom_call.1} parent=35 // pred_fallthru
          _
        // Predicated region
        $region49: #{tpu_custom_call.1} parent=35 // pred_check
          %p735 = pneg %p160
        $region50: #{tpu_custom_call.1} parent=35 // pred_check_branch
          %737 = sbr.rel (%p735) target = $region52
        $region51: #{tpu_custom_call.1} parent=35 // pred_region
          %s738 = smul.u32 8, %s27
          %s740 = ssub.s32 1024, 1024
          %741 = vsyncadd %s715, %s740
          %s742 = smul.addr %s738, 128
          %s743 = scalar_lea.hbm %s5, %s742
          %s744 = sshll.u32 %s718, 4
          %s745 = int_to_ptr.vmem [resolvable:$true] %s744
          %750 = dma.vmem_to_hbm [thread:$0]  %s745, 1024, %s743, %s715, 128, 128, 8
        $region52: #{tpu_custom_call.1} parent=35 // pred_fallthru
          _
      $region36: #{tpu_custom_call.1} parent=5 // pred_fallthru
        _
      %p751 = scmp.le.s32.totalorder 2, %s22
      // Predicated region
      $region53: #{tpu_custom_call.1} parent=5 // pred_check
        %p752 = pneg %p751
      $region54: #{tpu_custom_call.1} parent=5 // pred_check_branch
        %754 = sbr.rel (%p752) target = $region56
      $region55: #{tpu_custom_call.1} parent=5 // pred_region
        %s755 = ssub.s32 %s22, 2
        // Predicated region
        $region57: #{tpu_custom_call.1} parent=55 // pred_check
          %p756 = pneg %p140
        $region58: #{tpu_custom_call.1} parent=55 // pred_check_branch
          %758 = sbr.rel (%p756) target = $region60
        $region59: #{tpu_custom_call.1} parent=55 // pred_region
          %s759 = sand.u32 %s125, 1
          %s760 = scalar_lea.sflag [#allocation4], %s759
          %s761 = sand.u32 %s125, 1
          %s762 = smul.addr %s761, 64
          %s763 = scalar_lea.vmem [#allocation7], %s762
          %764 = dma.done %s760, 1024
        $region60: #{tpu_custom_call.1} parent=55 // pred_fallthru
          _
        // Predicated region
        $region61: #{tpu_custom_call.1} parent=55 // pred_check
          %p765 = pneg %p166
        $region62: #{tpu_custom_call.1} parent=55 // pred_check_branch
          %767 = sbr.rel (%p765) target = $region64
        $region63: #{tpu_custom_call.1} parent=55 // pred_region
          %s768 = sand.u32 %s151, 1
          %s769 = scalar_lea.sflag [#allocation9], %s768
          %s770 = sand.u32 %s151, 1
          %s771 = smul.addr %s770, 64
          %s772 = scalar_lea.vmem [#allocation8], %s771
          %773 = dma.done %s769, 1024
        $region64: #{tpu_custom_call.1} parent=55 // pred_fallthru
          _
      $region56: #{tpu_custom_call.1} parent=5 // pred_fallthru
        _
    $region6: #{tpu_custom_call.1} parent=1 // loop_footer
      %s26 = sadd.s32 1, %s22
    $region7: #{tpu_custom_call.1} parent=1 // loop_footer_branch
      %21 = sbr.rel target = $region3
    $region8: #{tpu_custom_call.1} parent=1 // loop_exit
      _
    %774 = vsyncpa [#allocation3], 1
    %s775 = scalar_lea.sflag [#allocation3], 1
    %776 = vsyncpa %s775, 1
    %777 = vsyncpa [#allocation6], 1
    %778 = vsyncpa [#allocation4], 1
    %s779 = scalar_lea.sflag [#allocation4], 1
    %780 = vsyncpa %s779, 1
    %781 = vsyncpa [#allocation9], 1
    %s782 = scalar_lea.sflag [#allocation9], 1
    %783 = vsyncpa %s782, 1

</llo_original>
